<compile_context>
chip_gen: v6e
topology: v6e:2x2x1
jax: 0.10.0
libtpu: 0.0.40
codegen_flags: <defaults>
</compile_context>

<pallas_src>
import functools
import math

import jax
import jax.numpy as jnp
from jax.experimental import pallas as pl
from jax.experimental.pallas import tpu as pltpu


_LANES = 512        # lane-dense last dim (multiple of 128)
_TILE_ROWS = 1024   # sublane rows per grid step (multiple of 8)


def _scop_skip_kernel(x_ref, o_ref):
    # Identity: stream one (tile_rows, lanes) block through VMEM unchanged.
    o_ref[...] = x_ref[...]


def _scop_none_kernel(o_ref):
    # Zero(): x.mul(0.) -> zeros of the same shape/dtype; x is never read.
    o_ref[...] = jnp.zeros_like(o_ref)


def _padded_layout(total, tile_rows, lanes):
    """Rows / tile / grid for a lane-dense 2-D view of `total` elements."""
    rows = max(1, -(-total // lanes))          # ceil(total / lanes)
    rows = -(-rows // 8) * 8                   # round up to a sublane multiple
    tile_rows = min(tile_rows, rows)
    tile_rows = max(8, (tile_rows // 8) * 8)   # keep a multiple of 8
    n_blocks = -(-rows // tile_rows)           # ceil
    rows = n_blocks * tile_rows
    return rows, tile_rows, n_blocks


@functools.partial(jax.jit, static_argnames=("primitive", "tile_rows", "lanes"))
def scop_forward(x, primitive="skip", *, tile_rows=_TILE_ROWS, lanes=_LANES):
    """F2GNN ScOp forward.  x: node embeddings of any shape (e.g. [N, H])."""
    if primitive not in ("skip", "none"):
        raise ValueError(f"unknown SC primitive: {primitive!r}")

    orig_shape = x.shape
    dtype = x.dtype
    total = math.prod(orig_shape) if orig_shape else 1
    itemsize = jnp.dtype(dtype).itemsize

    rows, tile_rows, n_blocks = _padded_layout(total, tile_rows, lanes)
    padded = rows * lanes

    if primitive == "skip":
        flat = x.reshape(-1)
        if padded != total:
            flat = jnp.pad(flat, (0, padded - total))
        x2 = flat.reshape(rows, lanes)

        out2 = pl.pallas_call(
            _scop_skip_kernel,
            out_shape=jax.ShapeDtypeStruct((rows, lanes), dtype),
            grid_spec=pltpu.PrefetchScalarGridSpec(
                num_scalar_prefetch=0,
                grid=(n_blocks,),
                in_specs=[pl.BlockSpec((tile_rows, lanes), lambda i: (i, 0))],
                out_specs=pl.BlockSpec((tile_rows, lanes), lambda i: (i, 0)),
            ),
            compiler_params=pltpu.CompilerParams(
                dimension_semantics=("parallel",)),
            cost_estimate=pl.CostEstimate(
                flops=0, transcendentals=0,
                bytes_accessed=2 * padded * itemsize),
        )(x2)
    else:  # 'none' — output-only kernel, no input DMA at all.
        out2 = pl.pallas_call(
            _scop_none_kernel,
            out_shape=jax.ShapeDtypeStruct((rows, lanes), dtype),
            grid_spec=pltpu.PrefetchScalarGridSpec(
                num_scalar_prefetch=0,
                grid=(n_blocks,),
                in_specs=[],
                out_specs=pl.BlockSpec((tile_rows, lanes), lambda i: (i, 0)),
            ),
            compiler_params=pltpu.CompilerParams(
                dimension_semantics=("parallel",)),
            cost_estimate=pl.CostEstimate(
                flops=0, transcendentals=0,
                bytes_accessed=padded * itemsize),
        )()

    return out2.reshape(-1)[:total].reshape(orig_shape)


def scop_reference(x, primitive):
    if primitive == "skip":
        return x
    return x * 0.0


if __name__ == "__main__":
    key = jax.random.PRNGKey(0)
    N, H = 200, 32  # nodes, hidden_size (N deliberately not a tile multiple)

    x = jax.random.normal(key, (N, H), dtype=jnp.float32)

    # 'skip' primitive (Identity)
    out_skip = jax.block_until_ready(scop_forward(x, "skip"))
    ref_skip = scop_reference(x, "skip")
    assert out_skip.shape == x.shape and out_skip.dtype == x.dtype
    assert jnp.allclose(out_skip, ref_skip, atol=0.0, rtol=0.0)

    # 'none' primitive (Zero)
    out_none = jax.block_until_ready(scop_forward(x, "none"))
    ref_none = scop_reference(x, "none")
    assert out_none.shape == x.shape and out_none.dtype == x.dtype
    assert jnp.allclose(out_none, ref_none, atol=0.0, rtol=0.0)

    print("KERNEL_OK")
</pallas_src>

<mosaic_0001>
module attributes {stable_mosaic.version = 11 : i64} {
  func.func @_scop_skip_kernel(%arg0: i32, %arg1: memref<16x512xf32, #tpu.memory_space<vmem>>, %arg2: memref<16x512xf32, #tpu.memory_space<vmem>>) attributes {dimension_semantics = [#tpu.dimension_semantics<parallel>], iteration_bounds = array<i64: 1>, scalar_prefetch = 0 : i64, scratch_operands = 0 : i64, tpu.core_type = #tpu.core_type<tc>, window_params = [{transform_indices = @transform_0, window_bounds = array<i64: 16, 512>}, {transform_indices = @transform_1, window_bounds = array<i64: 16, 512>}]} {
    %c0 = arith.constant 0 : index
    %c0_0 = arith.constant 0 : index
    %0 = vector.load %arg1[%c0, %c0_0] : memref<16x512xf32, #tpu.memory_space<vmem>>, vector<16x512xf32>
    %c0_1 = arith.constant 0 : index
    %c0_2 = arith.constant 0 : index
    %1 = vector.load %arg2[%c0_1, %c0_2] : memref<16x512xf32, #tpu.memory_space<vmem>>, vector<16x512xf32>
    tpu.vector_store %arg2[%c0_1, %c0_2], %0 {strides = array<i32>} : memref<16x512xf32, #tpu.memory_space<vmem>>, vector<16x512xf32>,
    return
  }
  func.func @transform_0(%arg0: i32) -> (i32, i32) {
    %c0_i32 = arith.constant 0 : i32
    %c0_i32_0 = arith.constant 0 : i32
    return %arg0, %c0_i32 : i32, i32
  }
  func.func @transform_1(%arg0: i32) -> (i32, i32) {
    %c0_i32 = arith.constant 0 : i32
    %c0_i32_0 = arith.constant 0 : i32
    return %arg0, %c0_i32 : i32, i32
  }
}

</mosaic_0001>

<llo_original>
// kernel: scop_forward.1
$region0: #{scop_forward.1}
  #allocation0 [shape = 'u32[]', space=smem, size = 0x4, offset = 0x4, fixed_abs, tag = 'smem constant byte address 0x4 - core index']
  #allocation1 [shape = 'u32[144,128]{1,0:T(1,128)}', space=vmem, size = 0x12000, scoped, tag = 'internal scratch']
  %s0 = inlined_call_operand.vmem [shape: f32[16,512], index: 0, kind: input, shape index: {}]
  %s1 = inlined_call_operand.vmem [shape: f32[16,512], index: 1, kind: output, shape index: {}]
  %s2 = sld [smem:[#allocation0]]
  $region14: #{scop_forward.1} parent=0
    _
  %s4 = ssub.s32 1, %s2
  %s5 = scalar_select 0, %s4, %s2
  // Predicated region
  $region2: #{scop_forward.1} parent=0 // pred_check
    _
  $region3: #{scop_forward.1} parent=0 // pred_check_branch
    %7 = sbr.rel (0) target = $region5
  $region4: #{scop_forward.1} parent=0 // pred_region
    _
  $region5: #{scop_forward.1} parent=0 // pred_fallthru
    _
  %v8 = vld [vmem:[%s0] sm:$0xff]
  %v9 = vld [vmem:[%s0 + $0x8] sm:$0xff]
  %v10 = vld [vmem:[%s0 + $0x10] sm:$0xff]
  %v11 = vld [vmem:[%s0 + $0x18] sm:$0xff]
  %v12 = vld [vmem:[%s0 + $0x20] sm:$0xff]
  %v13 = vld [vmem:[%s0 + $0x28] sm:$0xff]
  %v14 = vld [vmem:[%s0 + $0x30] sm:$0xff]
  %v15 = vld [vmem:[%s0 + $0x38] sm:$0xff]
  %16 = vst [vmem:[%s1] sm:$0xff] %v8
  %17 = vst [vmem:[%s1 + $0x8] sm:$0xff] %v9
  %18 = vst [vmem:[%s1 + $0x10] sm:$0xff] %v10
  %19 = vst [vmem:[%s1 + $0x18] sm:$0xff] %v11
  %20 = vst [vmem:[%s1 + $0x20] sm:$0xff] %v12
  %21 = vst [vmem:[%s1 + $0x28] sm:$0xff] %v13
  %22 = vst [vmem:[%s1 + $0x30] sm:$0xff] %v14
  %23 = vst [vmem:[%s1 + $0x38] sm:$0xff] %v15
  // Predicated region
  $region6: #{scop_forward.1} parent=0 // pred_check
    _
  $region7: #{scop_forward.1} parent=0 // pred_check_branch
    %25 = sbr.rel (0) target = $region9
  $region8: #{scop_forward.1} parent=0 // pred_region
    _
  $region9: #{scop_forward.1} parent=0 // pred_fallthru
    _
  // Predicated region
  $region10: #{scop_forward.1} parent=0 // pred_check
    _
  $region11: #{scop_forward.1} parent=0 // pred_check_branch
    %27 = sbr.rel (0) target = $region13
  $region12: #{scop_forward.1} parent=0 // pred_region
    _
  $region13: #{scop_forward.1} parent=0 // pred_fallthru
    _

</llo_original>
